<compile_context>
chip_gen: v6e
topology: v6e:2x2x1
jax: 0.10.0
libtpu: 0.0.40
codegen_flags: <defaults>
</compile_context>

<pallas_src>
import jax
import jax.numpy as jnp
from jax.experimental import pallas as pl
from jax.experimental.pallas import tpu as pltpu


_LANE = 128
_SUBLANE = 8
_VMEM_TILE_BUDGET = 24 * 1024 * 1024   # headroom under the 32 MiB scoped default
_MAX_TB_PHYS = 8192                    # ~32K logical rows at pack=4


def autoencoder_kernel(x_ref,
                       w1_ref, b1_ref,
                       w2_ref, b2_ref,
                       w3_ref, b3_ref,
                       w4_ref, b4_ref,
                       o_ref):
    # Matmuls run at the weights' storage dtype (f32 or bf16).  Accumulation,
    # bias-add, ReLU and the inter-layer activations stay f32; only the MXU
    # LHS inputs are cast down (safe on v5e's no-bf16 VPU as well).
    mxu_dt = w1_ref.dtype
    x = x_ref[...].astype(mxu_dt)

    # encoder: Linear(n_input, 16) -> ReLU          (block-diagonal packed)
    h = jnp.dot(x, w1_ref[...], preferred_element_type=jnp.float32)
    h = jnp.maximum(h + b1_ref[...], 0.0)

    # encoder: Linear(16, n_latent) -> ReLU
    z = jnp.dot(h.astype(mxu_dt), w2_ref[...], preferred_element_type=jnp.float32)
    z = jnp.maximum(z + b2_ref[...], 0.0)

    # decoder: Linear(n_latent, 16) -> ReLU
    d = jnp.dot(z.astype(mxu_dt), w3_ref[...], preferred_element_type=jnp.float32)
    d = jnp.maximum(d + b3_ref[...], 0.0)

    # decoder: Linear(16, n_output)   (no final activation)
    y = jnp.dot(d.astype(mxu_dt), w4_ref[...], preferred_element_type=jnp.float32)
    o_ref[...] = (y + b4_ref[...]).astype(o_ref.dtype)
    # Output block last dim is pack*n_output (=128 for the default dims), so
    # the store is lane-dense / unmasked.  pipeline_mode=pl.Buffered(3) on the
    # x/out specs is the next knob if a profile still shows exposed DMA.


def _lane_pad(n):
    return ((n + _LANE - 1) // _LANE) * _LANE


def _bytes_per_phys_row(packed_in, packed_out, packed_hidden, in_item, out_item):
    # Lane-padded VMEM bytes attributable to one physical row of the tile.
    b = 2 * _lane_pad(packed_in) * in_item      # x tile, double-buffered
    b += 2 * _lane_pad(packed_out) * out_item   # y tile, double-buffered
    for w in packed_hidden:                      # f32 intermediates (internal scratch)
        b += _lane_pad(w) * 4
    return b


def _pick_block_batch_phys(b_phys, bytes_per_row):
    # Big tiles amortize the ~0.35us per-grid-step overhead; cap by a
    # lane-padding-aware VMEM budget and keep >=2 (ideally even) grid steps so
    # both v7x TensorCores get work.
    tb = _VMEM_TILE_BUDGET // bytes_per_row
    tb = int(min(tb, _MAX_TB_PHYS, max(_SUBLANE, pl.cdiv(b_phys, 2))))
    tb = max(_SUBLANE, (tb // _SUBLANE) * _SUBLANE)
    steps = pl.cdiv(b_phys, tb)
    if steps > 1 and steps % 2 == 1:   # nudge to an even step count (megacore)
        tb = max(_SUBLANE,
                 ((pl.cdiv(b_phys, steps + 1) + _SUBLANE - 1) // _SUBLANE) * _SUBLANE)
    return tb


def _block_diag(w, pack):
    # (fin, fout) -> (pack*fin, pack*fout) with `w` repeated on the diagonal.
    if pack == 1:
        return w
    return jnp.kron(jnp.eye(pack, dtype=w.dtype), w)


def autoencoder_forward(x, params, *, block_batch_phys=None, storage_dtype=None):
    """x: (B, n_input). params: (in,out) weights 'w1..w4', (1,out) biases 'b1..b4'.

    storage_dtype: optional dtype (e.g. jnp.bfloat16) for x / weights / output
    storage; accumulation and activations stay f32 inside the kernel.
    """
    B, n_input = x.shape
    n_hidden = params["w1"].shape[1]          # 16
    n_latent = params["w2"].shape[1]
    n_output = params["w4"].shape[1]

    # ---- lane-dense row packing factor -------------------------------------
    pack = max(1, min(8, _LANE // max(n_input, n_output)))
    packed_in = pack * n_input
    packed_hid = pack * n_hidden
    packed_lat = pack * n_latent
    packed_out = pack * n_output

    # ---- dtypes -------------------------------------------------------------
    if storage_dtype is not None:
        x = x.astype(storage_dtype)
    in_item = jnp.dtype(x.dtype).itemsize
    out_item = in_item

    # ---- tile size / padding ------------------------------------------------
    b_phys = pl.cdiv(B, pack)
    bytes_per_row = _bytes_per_phys_row(packed_in, packed_out,
                                        (packed_hid, packed_lat, packed_hid),
                                        in_item, out_item)
    if block_batch_phys is None:
        tb = _pick_block_batch_phys(b_phys, bytes_per_row)
    else:
        tb = max(_SUBLANE, (int(block_batch_phys) // _SUBLANE) * _SUBLANE)

    b_phys_pad = pl.cdiv(b_phys, tb) * tb
    b_log_pad = b_phys_pad * pack
    if b_log_pad != B:
        x = jnp.pad(x, ((0, b_log_pad - B), (0, 0)))
    x = x.reshape(b_phys_pad, packed_in)

    # ---- block-diagonal weights / tiled biases ------------------------------
    # TODO(synk): in a real deployment precompute these packed params once.
    w_packed = {}
    for name in ("w1", "w2", "w3", "w4"):
        w = _block_diag(params[name].astype(jnp.float32), pack)
        if storage_dtype is not None:
            w = w.astype(storage_dtype)
        w_packed[name] = w
    b_packed = {name: jnp.tile(params[name].astype(jnp.float32), (1, pack))
                for name in ("b1", "b2", "b3", "b4")}

    def full_block(arr):
        # whole weight/bias tensor resident in VMEM; constant block index
        # suppresses per-step re-DMA in the Mosaic pipeline.
        return pl.BlockSpec(arr.shape, lambda i: (0, 0))

    grid = (b_phys_pad // tb,)

    # ---- cost / VMEM bookkeeping (lane-padded, as the hardware sees it) ------
    flops = 2 * b_phys_pad * (packed_in * packed_hid + packed_hid * packed_lat
                              + packed_lat * packed_hid + packed_hid * packed_out)
    io_bytes = b_phys_pad * (packed_in * in_item + packed_out * out_item)
    w_vmem = 0
    for arr in list(w_packed.values()) + list(b_packed.values()):
        io_bytes += arr.size * jnp.dtype(arr.dtype).itemsize
        w_vmem += (2 * max(arr.shape[0], _SUBLANE) * _lane_pad(arr.shape[1])
                   * jnp.dtype(arr.dtype).itemsize)
    vmem_limit = int(min(max(32 << 20, tb * bytes_per_row + w_vmem + (4 << 20)),
                         64 << 20))

    out = pl.pallas_call(
        autoencoder_kernel,
        out_shape=jax.ShapeDtypeStruct((b_phys_pad, packed_out), x.dtype),
        grid=grid,
        in_specs=[
            pl.BlockSpec((tb, packed_in), lambda i: (i, 0)),
            full_block(w_packed["w1"]), full_block(b_packed["b1"]),
            full_block(w_packed["w2"]), full_block(b_packed["b2"]),
            full_block(w_packed["w3"]), full_block(b_packed["b3"]),
            full_block(w_packed["w4"]), full_block(b_packed["b4"]),
        ],
        out_specs=pl.BlockSpec((tb, packed_out), lambda i: (i, 0)),
        compiler_params=pltpu.CompilerParams(
            dimension_semantics=("parallel",),
            vmem_limit_bytes=vmem_limit),
        cost_estimate=pl.CostEstimate(
            flops=flops, transcendentals=0, bytes_accessed=io_bytes),
    )(x,
      w_packed["w1"], b_packed["b1"],
      w_packed["w2"], b_packed["b2"],
      w_packed["w3"], b_packed["b3"],
      w_packed["w4"], b_packed["b4"])

    # unpack physical rows back to logical rows and drop padding
    return out.reshape(b_log_pad, n_output)[:B]


def init_params(key, n_input, n_latent, n_output):
    """PyTorch Linear default init: U(-1/sqrt(fan_in), +1/sqrt(fan_in)).
    Weights stored as (in_features, out_features)."""
    dims = [(n_input, 16), (16, n_latent), (n_latent, 16), (16, n_output)]
    params = {}
    keys = jax.random.split(key, 2 * len(dims))
    for idx, (fan_in, fan_out) in enumerate(dims):
        bound = 1.0 / (fan_in ** 0.5)
        params[f"w{idx + 1}"] = jax.random.uniform(
            keys[2 * idx], (fan_in, fan_out),
            minval=-bound, maxval=bound, dtype=jnp.float32)
        params[f"b{idx + 1}"] = jax.random.uniform(
            keys[2 * idx + 1], (1, fan_out),
            minval=-bound, maxval=bound, dtype=jnp.float32)
    return params


def reference_forward(x, p):
    h = jnp.maximum(x @ p["w1"] + p["b1"], 0.0)
    z = jnp.maximum(h @ p["w2"] + p["b2"], 0.0)
    d = jnp.maximum(z @ p["w3"] + p["b3"], 0.0)
    return d @ p["w4"] + p["b4"]


if __name__ == "__main__":
    n_input, n_latent, n_output = 32, 8, 32

    key = jax.random.PRNGKey(0)
    k_params, k_x = jax.random.split(key)
    params = init_params(k_params, n_input, n_latent, n_output)
    x = jax.random.normal(k_x, (16, n_input), dtype=jnp.float32)
    y_ref = reference_forward(x, params)

    # f32 storage, batch divisible by the packing factor
    y = jax.block_until_ready(autoencoder_forward(x, params))
    assert y.shape == (16, n_output)
    assert jnp.allclose(y, y_ref, atol=1e-5, rtol=1e-5), "f32 mismatch vs reference"

    # ragged batch (exercises the pad + pack path)
    x2 = x[:13]
    y2 = jax.block_until_ready(autoencoder_forward(x2, params))
    assert y2.shape == (13, n_output)
    assert jnp.allclose(y2, reference_forward(x2, params), atol=1e-5, rtol=1e-5), \
        "ragged-batch mismatch vs reference"

    # bf16 storage (halves HBM traffic; f32 accumulation / activations inside)
    y3 = jax.block_until_ready(
        autoencoder_forward(x, params, storage_dtype=jnp.bfloat16))
    assert y3.dtype == jnp.bfloat16
    assert jnp.allclose(y3.astype(jnp.float32), y_ref, atol=5e-2, rtol=5e-2), \
        "bf16 mismatch vs reference"

    print("KERNEL_OK")
</pallas_src>

<mosaic_0001>
module attributes {stable_mosaic.version = 11 : i64} {
  func.func @autoencoder_kernel(%arg0: i32, %arg1: memref<8x128xf32, #tpu.memory_space<vmem>>, %arg2: memref<128x64xf32, #tpu.memory_space<vmem>>, %arg3: memref<1x64xf32, #tpu.memory_space<vmem>>, %arg4: memref<64x32xf32, #tpu.memory_space<vmem>>, %arg5: memref<1x32xf32, #tpu.memory_space<vmem>>, %arg6: memref<32x64xf32, #tpu.memory_space<vmem>>, %arg7: memref<1x64xf32, #tpu.memory_space<vmem>>, %arg8: memref<64x128xf32, #tpu.memory_space<vmem>>, %arg9: memref<1x128xf32, #tpu.memory_space<vmem>>, %arg10: memref<8x128xf32, #tpu.memory_space<vmem>>) attributes {dimension_semantics = [#tpu.dimension_semantics<parallel>], iteration_bounds = array<i64: 1>, scalar_prefetch = 0 : i64, scratch_operands = 0 : i64, tpu.core_type = #tpu.core_type<tc>, window_params = [{transform_indices = @transform_0, window_bounds = array<i64: 8, 128>}, {pipeline_mode = #tpu.pipeline_mode<synchronous>, transform_indices = @transform_1, window_bounds = array<i64: 128, 64>}, {pipeline_mode = #tpu.pipeline_mode<synchronous>, transform_indices = @transform_2, window_bounds = array<i64: 1, 64>}, {pipeline_mode = #tpu.pipeline_mode<synchronous>, transform_indices = @transform_3, window_bounds = array<i64: 64, 32>}, {pipeline_mode = #tpu.pipeline_mode<synchronous>, transform_indices = @transform_4, window_bounds = array<i64: 1, 32>}, {pipeline_mode = #tpu.pipeline_mode<synchronous>, transform_indices = @transform_5, window_bounds = array<i64: 32, 64>}, {pipeline_mode = #tpu.pipeline_mode<synchronous>, transform_indices = @transform_6, window_bounds = array<i64: 1, 64>}, {pipeline_mode = #tpu.pipeline_mode<synchronous>, transform_indices = @transform_7, window_bounds = array<i64: 64, 128>}, {pipeline_mode = #tpu.pipeline_mode<synchronous>, transform_indices = @transform_8, window_bounds = array<i64: 1, 128>}, {transform_indices = @transform_9, window_bounds = array<i64: 8, 128>}]} {
    %c0 = arith.constant 0 : index
    %c0_0 = arith.constant 0 : index
    %0 = vector.load %arg1[%c0, %c0_0] : memref<8x128xf32, #tpu.memory_space<vmem>>, vector<8x128xf32>
    %c0_1 = arith.constant 0 : index
    %c0_2 = arith.constant 0 : index
    %1 = vector.load %arg2[%c0_1, %c0_2] : memref<128x64xf32, #tpu.memory_space<vmem>>, vector<128x64xf32>
    %cst = arith.constant dense<0.000000e+00> : vector<8x64xf32>
    %2 = tpu.matmul %0, %1, %cst {dimension_numbers = #tpu.dot_dimension_numbers<[1], [0], [0], [1], [0, 0, 1, 1], [], []>} : vector<8x128xf32>, vector<128x64xf32>, vector<8x64xf32> -> vector<8x64xf32>
    %c0_3 = arith.constant 0 : index
    %c0_4 = arith.constant 0 : index
    %3 = vector.load %arg3[%c0_3, %c0_4] : memref<1x64xf32, #tpu.memory_space<vmem>>, vector<1x64xf32>
    %4 = vector.broadcast %3 : vector<1x64xf32> to vector<8x64xf32>
    %5 = arith.addf %2, %4 : vector<8x64xf32>
    %cst_5 = arith.constant 0.000000e+00 : f32
    %6 = vector.broadcast %cst_5 : f32 to vector<8x64xf32>
    %7 = arith.maximumf %5, %6 : vector<8x64xf32>
    %c0_6 = arith.constant 0 : index
    %c0_7 = arith.constant 0 : index
    %8 = vector.load %arg4[%c0_6, %c0_7] : memref<64x32xf32, #tpu.memory_space<vmem>>, vector<64x32xf32>
    %cst_8 = arith.constant dense<0.000000e+00> : vector<8x32xf32>
    %9 = tpu.matmul %7, %8, %cst_8 {dimension_numbers = #tpu.dot_dimension_numbers<[1], [0], [0], [1], [0, 0, 1, 1], [], []>} : vector<8x64xf32>, vector<64x32xf32>, vector<8x32xf32> -> vector<8x32xf32>
    %c0_9 = arith.constant 0 : index
    %c0_10 = arith.constant 0 : index
    %10 = vector.load %arg5[%c0_9, %c0_10] : memref<1x32xf32, #tpu.memory_space<vmem>>, vector<1x32xf32>
    %11 = vector.broadcast %10 : vector<1x32xf32> to vector<8x32xf32>
    %12 = arith.addf %9, %11 : vector<8x32xf32>
    %cst_11 = arith.constant 0.000000e+00 : f32
    %13 = vector.broadcast %cst_11 : f32 to vector<8x32xf32>
    %14 = arith.maximumf %12, %13 : vector<8x32xf32>
    %c0_12 = arith.constant 0 : index
    %c0_13 = arith.constant 0 : index
    %15 = vector.load %arg6[%c0_12, %c0_13] : memref<32x64xf32, #tpu.memory_space<vmem>>, vector<32x64xf32>
    %cst_14 = arith.constant dense<0.000000e+00> : vector<8x64xf32>
    %16 = tpu.matmul %14, %15, %cst_14 {dimension_numbers = #tpu.dot_dimension_numbers<[1], [0], [0], [1], [0, 0, 1, 1], [], []>} : vector<8x32xf32>, vector<32x64xf32>, vector<8x64xf32> -> vector<8x64xf32>
    %c0_15 = arith.constant 0 : index
    %c0_16 = arith.constant 0 : index
    %17 = vector.load %arg7[%c0_15, %c0_16] : memref<1x64xf32, #tpu.memory_space<vmem>>, vector<1x64xf32>
    %18 = vector.broadcast %17 : vector<1x64xf32> to vector<8x64xf32>
    %19 = arith.addf %16, %18 : vector<8x64xf32>
    %cst_17 = arith.constant 0.000000e+00 : f32
    %20 = vector.broadcast %cst_17 : f32 to vector<8x64xf32>
    %21 = arith.maximumf %19, %20 : vector<8x64xf32>
    %c0_18 = arith.constant 0 : index
    %c0_19 = arith.constant 0 : index
    %22 = vector.load %arg8[%c0_18, %c0_19] : memref<64x128xf32, #tpu.memory_space<vmem>>, vector<64x128xf32>
    %cst_20 = arith.constant dense<0.000000e+00> : vector<8x128xf32>
    %23 = tpu.matmul %21, %22, %cst_20 {dimension_numbers = #tpu.dot_dimension_numbers<[1], [0], [0], [1], [0, 0, 1, 1], [], []>} : vector<8x64xf32>, vector<64x128xf32>, vector<8x128xf32> -> vector<8x128xf32>
    %c0_21 = arith.constant 0 : index
    %c0_22 = arith.constant 0 : index
    %24 = vector.load %arg9[%c0_21, %c0_22] : memref<1x128xf32, #tpu.memory_space<vmem>>, vector<1x128xf32>
    %25 = vector.broadcast %24 : vector<1x128xf32> to vector<8x128xf32>
    %26 = arith.addf %23, %25 : vector<8x128xf32>
    %c0_23 = arith.constant 0 : index
    %c0_24 = arith.constant 0 : index
    %27 = vector.load %arg10[%c0_23, %c0_24] : memref<8x128xf32, #tpu.memory_space<vmem>>, vector<8x128xf32>
    tpu.vector_store %arg10[%c0_23, %c0_24], %26 {strides = array<i32>} : memref<8x128xf32, #tpu.memory_space<vmem>>, vector<8x128xf32>,
    return
  }
  func.func @transform_0(%arg0: i32) -> (i32, i32) {
    %c0_i32 = arith.constant 0 : i32
    %c0_i32_0 = arith.constant 0 : i32
    return %arg0, %c0_i32 : i32, i32
  }
  func.func @transform_1(%arg0: i32) -> (i32, i32) {
    %c0_i32 = arith.constant 0 : i32
    %c0_i32_0 = arith.constant 0 : i32
    %c0_i32_1 = arith.constant 0 : i32
    return %c0_i32, %c0_i32_0 : i32, i32
  }
  func.func @transform_2(%arg0: i32) -> (i32, i32) {
    %c0_i32 = arith.constant 0 : i32
    %c0_i32_0 = arith.constant 0 : i32
    %c0_i32_1 = arith.constant 0 : i32
    return %c0_i32, %c0_i32_0 : i32, i32
  }
  func.func @transform_3(%arg0: i32) -> (i32, i32) {
    %c0_i32 = arith.constant 0 : i32
    %c0_i32_0 = arith.constant 0 : i32
    %c0_i32_1 = arith.constant 0 : i32
    return %c0_i32, %c0_i32_0 : i32, i32
  }
  func.func @transform_4(%arg0: i32) -> (i32, i32) {
    %c0_i32 = arith.constant 0 : i32
    %c0_i32_0 = arith.constant 0 : i32
    %c0_i32_1 = arith.constant 0 : i32
    return %c0_i32, %c0_i32_0 : i32, i32
  }
  func.func @transform_5(%arg0: i32) -> (i32, i32) {
    %c0_i32 = arith.constant 0 : i32
    %c0_i32_0 = arith.constant 0 : i32
    %c0_i32_1 = arith.constant 0 : i32
    return %c0_i32, %c0_i32_0 : i32, i32
  }
  func.func @transform_6(%arg0: i32) -> (i32, i32) {
    %c0_i32 = arith.constant 0 : i32
    %c0_i32_0 = arith.constant 0 : i32
    %c0_i32_1 = arith.constant 0 : i32
    return %c0_i32, %c0_i32_0 : i32, i32
  }
  func.func @transform_7(%arg0: i32) -> (i32, i32) {
    %c0_i32 = arith.constant 0 : i32
    %c0_i32_0 = arith.constant 0 : i32
    %c0_i32_1 = arith.constant 0 : i32
    return %c0_i32, %c0_i32_0 : i32, i32
  }
  func.func @transform_8(%arg0: i32) -> (i32, i32) {
    %c0_i32 = arith.constant 0 : i32
    %c0_i32_0 = arith.constant 0 : i32
    %c0_i32_1 = arith.constant 0 : i32
    return %c0_i32, %c0_i32_0 : i32, i32
  }
  func.func @transform_9(%arg0: i32) -> (i32, i32) {
    %c0_i32 = arith.constant 0 : i32
    %c0_i32_0 = arith.constant 0 : i32
    return %arg0, %c0_i32 : i32, i32
  }
}

</mosaic_0001>

<llo_original>
// kernel: tpu_custom_call.1
$region0: #{tpu_custom_call.1}
  #allocation0 [shape = 'u32[]', space=smem, size = 0x4, offset = 0x4, fixed_abs, tag = 'smem constant byte address 0x4 - core index']
  #allocation1 [shape = 'u32[144,128]{1,0:T(1,128)}', space=vmem, size = 0x12000, scoped, tag = 'internal scratch']
  %s0 = inlined_call_operand.vmem [shape: f32[8,128], index: 0, kind: input, shape index: {}]
  %s1 = inlined_call_operand.vmem [shape: f32[128,64], index: 1, kind: input, shape index: {}]
  %s2 = inlined_call_operand.vmem [shape: f32[1,64], index: 2, kind: input, shape index: {}]
  %s3 = inlined_call_operand.vmem [shape: f32[64,32], index: 3, kind: input, shape index: {}]
  %s4 = inlined_call_operand.vmem [shape: f32[1,32], index: 4, kind: input, shape index: {}]
  %s5 = inlined_call_operand.vmem [shape: f32[32,64], index: 5, kind: input, shape index: {}]
  %s6 = inlined_call_operand.vmem [shape: f32[1,64], index: 6, kind: input, shape index: {}]
  %s7 = inlined_call_operand.vmem [shape: f32[64,128], index: 7, kind: input, shape index: {}]
  %s8 = inlined_call_operand.vmem [shape: f32[1,128], index: 8, kind: input, shape index: {}]
  %s9 = inlined_call_operand.hbm [shape: f32[8,128], index: 9, kind: output, shape index: {}]
  %s10 = sld [smem:[#allocation0]]
  $region46: #{tpu_custom_call.1} parent=0
    _
  %s12 = ssub.s32 1, %s10
  %s13 = scalar_select 0, %s12, %s10
  $region1: #{tpu_custom_call.1} parent=0
    #allocation2 [shape = 'u8[4096]{0}', space=vmem, size = 0x1000, scoped, tag = 'output window, operand 0, single buffered']
    #allocation3 [shape = 's32[1]{0}', space=sflag, size = 0x4, scoped, tag = 'scoped memory for tpu_custom_call.1']
    %14 = vsyncpa [#allocation3], 0
    // Predicated region
    $region2: #{tpu_custom_call.1} parent=1 // pred_check
      _
    $region3: #{tpu_custom_call.1} parent=1 // pred_check_branch
      %16 = sbr.rel (0) target = $region5
    $region4: #{tpu_custom_call.1} parent=1 // pred_region
      _
    $region5: #{tpu_custom_call.1} parent=1 // pred_fallthru
      _
    // Predicated region
    $region6: #{tpu_custom_call.1} parent=1 // pred_check
      _
    $region7: #{tpu_custom_call.1} parent=1 // pred_check_branch
      %18 = sbr.rel (0) target = $region9
    $region8: #{tpu_custom_call.1} parent=1 // pred_region
      _
    $region9: #{tpu_custom_call.1} parent=1 // pred_fallthru
      _
    // Predicated region
    $region10: #{tpu_custom_call.1} parent=1 // pred_check
      _
    $region11: #{tpu_custom_call.1} parent=1 // pred_check_branch
      %20 = sbr.rel (0) target = $region13
    $region12: #{tpu_custom_call.1} parent=1 // pred_region
      _
    $region13: #{tpu_custom_call.1} parent=1 // pred_fallthru
      _
    // Predicated region
    $region14: #{tpu_custom_call.1} parent=1 // pred_check
      _
    $region15: #{tpu_custom_call.1} parent=1 // pred_check_branch
      %22 = sbr.rel (0) target = $region17
    $region16: #{tpu_custom_call.1} parent=1 // pred_region
      _
    $region17: #{tpu_custom_call.1} parent=1 // pred_fallthru
      _
    // Predicated region
    $region18: #{tpu_custom_call.1} parent=1 // pred_check
      _
    $region19: #{tpu_custom_call.1} parent=1 // pred_check_branch
      %24 = sbr.rel (0) target = $region21
    $region20: #{tpu_custom_call.1} parent=1 // pred_region
      _
    $region21: #{tpu_custom_call.1} parent=1 // pred_fallthru
      _
    // Predicated region
    $region22: #{tpu_custom_call.1} parent=1 // pred_check
      _
    $region23: #{tpu_custom_call.1} parent=1 // pred_check_branch
      %26 = sbr.rel (0) target = $region25
    $region24: #{tpu_custom_call.1} parent=1 // pred_region
      _
    $region25: #{tpu_custom_call.1} parent=1 // pred_fallthru
      _
    // Predicated region
    $region26: #{tpu_custom_call.1} parent=1 // pred_check
      _
    $region27: #{tpu_custom_call.1} parent=1 // pred_check_branch
      %28 = sbr.rel (0) target = $region29
    $region28: #{tpu_custom_call.1} parent=1 // pred_region
      _
    $region29: #{tpu_custom_call.1} parent=1 // pred_fallthru
      _
    // Predicated region
    $region30: #{tpu_custom_call.1} parent=1 // pred_check
      _
    $region31: #{tpu_custom_call.1} parent=1 // pred_check_branch
      %30 = sbr.rel (0) target = $region33
    $region32: #{tpu_custom_call.1} parent=1 // pred_region
      _
    $region33: #{tpu_custom_call.1} parent=1 // pred_fallthru
      _
    // Predicated region
    $region34: #{tpu_custom_call.1} parent=1 // pred_check
      _
    $region35: #{tpu_custom_call.1} parent=1 // pred_check_branch
      %32 = sbr.rel (0) target = $region37
    $region36: #{tpu_custom_call.1} parent=1 // pred_region
      _
    $region37: #{tpu_custom_call.1} parent=1 // pred_fallthru
      _
    %v33 = vld [vmem:[%s0] sm:$0xff]
    %v34 = vld [vmem:[%s1] sm:$0xff]
    %v35 = vld [vmem:[%s1 + $0x8] sm:$0xff]
    %v36 = vld [vmem:[%s1 + $0x10] sm:$0xff]
    %v37 = vld [vmem:[%s1 + $0x18] sm:$0xff]
    %v38 = vld [vmem:[%s1 + $0x20] sm:$0xff]
    %v39 = vld [vmem:[%s1 + $0x28] sm:$0xff]
    %v40 = vld [vmem:[%s1 + $0x30] sm:$0xff]
    %v41 = vld [vmem:[%s1 + $0x38] sm:$0xff]
    %v42 = vld [vmem:[%s1 + $0x40] sm:$0xff]
    %v43 = vld [vmem:[%s1 + $0x48] sm:$0xff]
    %v44 = vld [vmem:[%s1 + $0x50] sm:$0xff]
    %v45 = vld [vmem:[%s1 + $0x58] sm:$0xff]
    %v46 = vld [vmem:[%s1 + $0x60] sm:$0xff]
    %v47 = vld [vmem:[%s1 + $0x68] sm:$0xff]
    %v48 = vld [vmem:[%s1 + $0x70] sm:$0xff]
    %v49 = vld [vmem:[%s1 + $0x78] sm:$0xff]
    %v50 = vld [vmem:[%s2] sm:$0x1]
    %v52 = vlaneseq
    %v53 = vshrl.u32 %v52, 7
    %v54 = vsub.s32 0, %v53
    %v55 = vrot.slane %v50, %v54
    %57 = vmatprep.subr.mxu0 0.0
    %58 = vmatpush1.msra.mxu0 %v49
    %59 = vmatprep.subr.mxu0 0.0
    %60 = vmatpush1.msra.mxu0 %v48
    %61 = vmatprep.subr.mxu0 0.0
    %62 = vmatpush1.msra.mxu0 %v47
    %63 = vmatprep.subr.mxu0 0.0
    %64 = vmatpush1.msra.mxu0 %v46
    %65 = vmatprep.subr.mxu0 0.0
    %66 = vmatpush1.msra.mxu0 %v45
    %67 = vmatprep.subr.mxu0 0.0
    %68 = vmatpush1.msra.mxu0 %v44
    %69 = vmatprep.subr.mxu0 0.0
    %70 = vmatpush1.msra.mxu0 %v43
    %71 = vmatprep.subr.mxu0 0.0
    %72 = vmatpush1.msra.mxu0 %v42
    %73 = vmatprep.subr.mxu0 0.0
    %74 = vmatpush1.msra.mxu0 %v41
    %75 = vmatprep.subr.mxu0 0.0
    %76 = vmatpush1.msra.mxu0 %v40
    %77 = vmatprep.subr.mxu0 0.0
    %78 = vmatpush1.msra.mxu0 %v39
    %79 = vmatprep.subr.mxu0 0.0
    %80 = vmatpush1.msra.mxu0 %v38
    %81 = vmatprep.subr.mxu0 0.0
    %82 = vmatpush1.msra.mxu0 %v37
    %83 = vmatprep.subr.mxu0 0.0
    %84 = vmatpush1.msra.mxu0 %v36
    %85 = vmatprep.subr.mxu0 0.0
    %86 = vmatpush1.msra.mxu0 %v35
    %87 = vmatprep.subr.mxu0 0.0
    %88 = vmatpush1.msra.mxu0 %v34
    %89 = vmatprep.subr.mxu0 0.0
    %90 = vmatpush2.msra.mxu0 0.0
    %91 = vmatprep.subr.mxu0 0.0
    %92 = vmatpush2.msra.mxu0 0.0
    %93 = vmatprep.subr.mxu0 0.0
    %94 = vmatpush2.msra.mxu0 0.0
    %95 = vmatprep.subr.mxu0 0.0
    %96 = vmatpush2.msra.mxu0 0.0
    %97 = vmatprep.subr.mxu0 0.0
    %98 = vmatpush2.msra.mxu0 0.0
    %99 = vmatprep.subr.mxu0 0.0
    %100 = vmatpush2.msra.mxu0 0.0
    %101 = vmatprep.subr.mxu0 0.0
    %102 = vmatpush2.msra.mxu0 0.0
    %103 = vmatprep.subr.mxu0 0.0
    %104 = vmatpush2.msra.mxu0 0.0
    %105 = vmatprep.subr.mxu0 0.0
    %106 = vmatpush2.msra.mxu0 0.0
    %107 = vmatprep.subr.mxu0 0.0
    %108 = vmatpush2.msra.mxu0 0.0
    %109 = vmatprep.subr.mxu0 0.0
    %110 = vmatpush2.msra.mxu0 0.0
    %111 = vmatprep.subr.mxu0 0.0
    %112 = vmatpush2.msra.mxu0 0.0
    %113 = vmatprep.subr.mxu0 0.0
    %114 = vmatpush2.msra.mxu0 0.0
    %115 = vmatprep.subr.mxu0 0.0
    %116 = vmatpush2.msra.mxu0 0.0
    %117 = vmatprep.subr.mxu0 0.0
    %118 = vmatpush2.msra.mxu0 0.0
    %119 = vmatprep.subr.mxu0 0.0
    %120 = vmatpush2.msra.mxu0 0.0
    %121 = vmatprep.mubr.f32.mxu0 0.0
    %122 = vmatmul.mubr.f32.gmra.mxu0 %v33
    %v123 = vpop.f32.mrf.mxu0
    %v124 = vadd.f32 %v55, %v123
    %v125 = vpop.f32.mrf.mxu0
    %126 = vdwg.mxu0
    %v127 = vmax.f32 %v124, 0.0
    %v128 = vld [vmem:[%s3] sm:$0xff]
    %v129 = vld [vmem:[%s3 + $0x8] sm:$0xff]
    %v130 = vld [vmem:[%s3 + $0x10] sm:$0xff]
    %v131 = vld [vmem:[%s3 + $0x18] sm:$0xff]
    %v132 = vld [vmem:[%s3 + $0x20] sm:$0xff]
    %v133 = vld [vmem:[%s3 + $0x28] sm:$0xff]
    %v134 = vld [vmem:[%s3 + $0x30] sm:$0xff]
    %v135 = vld [vmem:[%s3 + $0x38] sm:$0xff]
    %v136 = vld [vmem:[%s4] sm:$0x1]
    %v138 = vlaneseq
    %v139 = vshrl.u32 %v138, 7
    %v140 = vsub.s32 0, %v139
    %v141 = vrot.slane %v136, %v140
    %vm143 = vcmask 523264
    %v145 = vsel %vm143, %v127, 0
    %147 = vmatprep.subr.mxu0 0.0
    %148 = vmatpush1.msra.mxu0 0.0
    %149 = vmatprep.subr.mxu0 0.0
    %150 = vmatpush1.msra.mxu0 0.0
    %151 = vmatprep.subr.mxu0 0.0
    %152 = vmatpush1.msra.mxu0 0.0
    %153 = vmatprep.subr.mxu0 0.0
    %154 = vmatpush1.msra.mxu0 0.0
    %155 = vmatprep.subr.mxu0 0.0
    %156 = vmatpush1.msra.mxu0 0.0
    %157 = vmatprep.subr.mxu0 0.0
    %158 = vmatpush1.msra.mxu0 0.0
    %159 = vmatprep.subr.mxu0 0.0
    %160 = vmatpush1.msra.mxu0 0.0
    %161 = vmatprep.subr.mxu0 0.0
    %162 = vmatpush1.msra.mxu0 0.0
    %163 = vmatprep.subr.mxu0 0.0
    %164 = vmatpush1.msra.mxu0 %v135
    %165 = vmatprep.subr.mxu0 0.0
    %166 = vmatpush1.msra.mxu0 %v134
    %167 = vmatprep.subr.mxu0 0.0
    %168 = vmatpush1.msra.mxu0 %v133
    %169 = vmatprep.subr.mxu0 0.0
    %170 = vmatpush1.msra.mxu0 %v132
    %171 = vmatprep.subr.mxu0 0.0
    %172 = vmatpush1.msra.mxu0 %v131
    %173 = vmatprep.subr.mxu0 0.0
    %174 = vmatpush1.msra.mxu0 %v130
    %175 = vmatprep.subr.mxu0 0.0
    %176 = vmatpush1.msra.mxu0 %v129
    %177 = vmatprep.subr.mxu0 0.0
    %178 = vmatpush1.msra.mxu0 %v128
    %179 = vmatprep.subr.mxu0 0.0
    %180 = vmatpush2.msra.mxu0 0.0
    %181 = vmatprep.subr.mxu0 0.0
    %182 = vmatpush2.msra.mxu0 0.0
    %183 = vmatprep.subr.mxu0 0.0
    %184 = vmatpush2.msra.mxu0 0.0
    %185 = vmatprep.subr.mxu0 0.0
    %186 = vmatpush2.msra.mxu0 0.0
    %187 = vmatprep.subr.mxu0 0.0
    %188 = vmatpush2.msra.mxu0 0.0
    %189 = vmatprep.subr.mxu0 0.0
    %190 = vmatpush2.msra.mxu0 0.0
    %191 = vmatprep.subr.mxu0 0.0
    %192 = vmatpush2.msra.mxu0 0.0
    %193 = vmatprep.subr.mxu0 0.0
    %194 = vmatpush2.msra.mxu0 0.0
    %195 = vmatprep.subr.mxu0 0.0
    %196 = vmatpush2.msra.mxu0 0.0
    %197 = vmatprep.subr.mxu0 0.0
    %198 = vmatpush2.msra.mxu0 0.0
    %199 = vmatprep.subr.mxu0 0.0
    %200 = vmatpush2.msra.mxu0 0.0
    %201 = vmatprep.subr.mxu0 0.0
    %202 = vmatpush2.msra.mxu0 0.0
    %203 = vmatprep.subr.mxu0 0.0
    %204 = vmatpush2.msra.mxu0 0.0
    %205 = vmatprep.subr.mxu0 0.0
    %206 = vmatpush2.msra.mxu0 0.0
    %207 = vmatprep.subr.mxu0 0.0
    %208 = vmatpush2.msra.mxu0 0.0
    %209 = vmatprep.subr.mxu0 0.0
    %210 = vmatpush2.msra.mxu0 0.0
    %211 = vmatprep.mubr.f32.mxu0 0.0
    %212 = vmatmul.mubr.f32.gmra.mxu0 %v145
    %v213 = vpop.f32.mrf.mxu0
    %v214 = vadd.f32 %v141, %v213
    %v215 = vpop.f32.mrf.mxu0
    %216 = vdwg.mxu0
    %v217 = vmax.f32 %v214, 0.0
    %v218 = vld [vmem:[%s5] sm:$0xff]
    %v219 = vld [vmem:[%s5 + $0x8] sm:$0xff]
    %v220 = vld [vmem:[%s5 + $0x10] sm:$0xff]
    %v221 = vld [vmem:[%s5 + $0x18] sm:$0xff]
    %v222 = vld [vmem:[%s6] sm:$0x1]
    %v224 = vlaneseq
    %v225 = vshrl.u32 %v224, 7
    %v226 = vsub.s32 0, %v225
    %v227 = vrot.slane %v222, %v226
    %vm229 = vcmask 261120
    %v231 = vsel %vm229, %v217, 0
    %233 = vmatprep.subr.mxu0 0.0
    %234 = vmatpush1.msra.mxu0 0.0
    %235 = vmatprep.subr.mxu0 0.0
    %236 = vmatpush1.msra.mxu0 0.0
    %237 = vmatprep.subr.mxu0 0.0
    %238 = vmatpush1.msra.mxu0 0.0
    %239 = vmatprep.subr.mxu0 0.0
    %240 = vmatpush1.msra.mxu0 0.0
    %241 = vmatprep.subr.mxu0 0.0
    %242 = vmatpush1.msra.mxu0 0.0
    %243 = vmatprep.subr.mxu0 0.0
    %244 = vmatpush1.msra.mxu0 0.0
    %245 = vmatprep.subr.mxu0 0.0
    %246 = vmatpush1.msra.mxu0 0.0
    %247 = vmatprep.subr.mxu0 0.0
    %248 = vmatpush1.msra.mxu0 0.0
    %249 = vmatprep.subr.mxu0 0.0
    %250 = vmatpush1.msra.mxu0 0.0
    %251 = vmatprep.subr.mxu0 0.0
    %252 = vmatpush1.msra.mxu0 0.0
    %253 = vmatprep.subr.mxu0 0.0
    %254 = vmatpush1.msra.mxu0 0.0
    %255 = vmatprep.subr.mxu0 0.0
    %256 = vmatpush1.msra.mxu0 0.0
    %257 = vmatprep.subr.mxu0 0.0
    %258 = vmatpush1.msra.mxu0 %v221
    %259 = vmatprep.subr.mxu0 0.0
    %260 = vmatpush1.msra.mxu0 %v220
    %261 = vmatprep.subr.mxu0 0.0
    %262 = vmatpush1.msra.mxu0 %v219
    %263 = vmatprep.subr.mxu0 0.0
    %264 = vmatpush1.msra.mxu0 %v218
    %265 = vmatprep.subr.mxu0 0.0
    %266 = vmatpush2.msra.mxu0 0.0
    %267 = vmatprep.subr.mxu0 0.0
    %268 = vmatpush2.msra.mxu0 0.0
    %269 = vmatprep.subr.mxu0 0.0
    %270 = vmatpush2.msra.mxu0 0.0
    %271 = vmatprep.subr.mxu0 0.0
    %272 = vmatpush2.msra.mxu0 0.0
    %273 = vmatprep.subr.mxu0 0.0
    %274 = vmatpush2.msra.mxu0 0.0
    %275 = vmatprep.subr.mxu0 0.0
    %276 = vmatpush2.msra.mxu0 0.0
    %277 = vmatprep.subr.mxu0 0.0
    %278 = vmatpush2.msra.mxu0 0.0
    %279 = vmatprep.subr.mxu0 0.0
    %280 = vmatpush2.msra.mxu0 0.0
    %281 = vmatprep.subr.mxu0 0.0
    %282 = vmatpush2.msra.mxu0 0.0
    %283 = vmatprep.subr.mxu0 0.0
    %284 = vmatpush2.msra.mxu0 0.0
    %285 = vmatprep.subr.mxu0 0.0
    %286 = vmatpush2.msra.mxu0 0.0
    %287 = vmatprep.subr.mxu0 0.0
    %288 = vmatpush2.msra.mxu0 0.0
    %289 = vmatprep.subr.mxu0 0.0
    %290 = vmatpush2.msra.mxu0 0.0
    %291 = vmatprep.subr.mxu0 0.0
    %292 = vmatpush2.msra.mxu0 0.0
    %293 = vmatprep.subr.mxu0 0.0
    %294 = vmatpush2.msra.mxu0 0.0
    %295 = vmatprep.subr.mxu0 0.0
    %296 = vmatpush2.msra.mxu0 0.0
    %297 = vmatprep.mubr.f32.mxu0 0.0
    %298 = vmatmul.mubr.f32.gmra.mxu0 %v231
    %v299 = vpop.f32.mrf.mxu0
    %v300 = vadd.f32 %v227, %v299
    %v301 = vpop.f32.mrf.mxu0
    %302 = vdwg.mxu0
    %v303 = vmax.f32 %v300, 0.0
    %v304 = vld [vmem:[%s7] sm:$0xff]
    %v305 = vld [vmem:[%s7 + $0x8] sm:$0xff]
    %v306 = vld [vmem:[%s7 + $0x10] sm:$0xff]
    %v307 = vld [vmem:[%s7 + $0x18] sm:$0xff]
    %v308 = vld [vmem:[%s7 + $0x20] sm:$0xff]
    %v309 = vld [vmem:[%s7 + $0x28] sm:$0xff]
    %v310 = vld [vmem:[%s7 + $0x30] sm:$0xff]
    %v311 = vld [vmem:[%s7 + $0x38] sm:$0xff]
    %v312 = vld [vmem:[%s8] sm:$0x1]
    %v314 = vlaneseq
    %v315 = vshrl.u32 %v314, 7
    %v316 = vsub.s32 0, %v315
    %v317 = vrot.slane %v312, %v316
    %v320 = vsel %vm143, %v303, 0
    %322 = vmatprep.subr.mxu0 0.0
    %323 = vmatpush1.msra.mxu0 0.0
    %324 = vmatprep.subr.mxu0 0.0
    %325 = vmatpush1.msra.mxu0 0.0
    %326 = vmatprep.subr.mxu0 0.0
    %327 = vmatpush1.msra.mxu0 0.0
    %328 = vmatprep.subr.mxu0 0.0
    %329 = vmatpush1.msra.mxu0 0.0
    %330 = vmatprep.subr.mxu0 0.0
    %331 = vmatpush1.msra.mxu0 0.0
    %332 = vmatprep.subr.mxu0 0.0
    %333 = vmatpush1.msra.mxu0 0.0
    %334 = vmatprep.subr.mxu0 0.0
    %335 = vmatpush1.msra.mxu0 0.0
    %336 = vmatprep.subr.mxu0 0.0
    %337 = vmatpush1.msra.mxu0 0.0
    %338 = vmatprep.subr.mxu0 0.0
    %339 = vmatpush1.msra.mxu0 %v311
    %340 = vmatprep.subr.mxu0 0.0
    %341 = vmatpush1.msra.mxu0 %v310
    %342 = vmatprep.subr.mxu0 0.0
    %343 = vmatpush1.msra.mxu0 %v309
    %344 = vmatprep.subr.mxu0 0.0
    %345 = vmatpush1.msra.mxu0 %v308
    %346 = vmatprep.subr.mxu0 0.0
    %347 = vmatpush1.msra.mxu0 %v307
    %348 = vmatprep.subr.mxu0 0.0
    %349 = vmatpush1.msra.mxu0 %v306
    %350 = vmatprep.subr.mxu0 0.0
    %351 = vmatpush1.msra.mxu0 %v305
    %352 = vmatprep.subr.mxu0 0.0
    %353 = vmatpush1.msra.mxu0 %v304
    %354 = vmatprep.subr.mxu0 0.0
    %355 = vmatpush2.msra.mxu0 0.0
    %356 = vmatprep.subr.mxu0 0.0
    %357 = vmatpush2.msra.mxu0 0.0
    %358 = vmatprep.subr.mxu0 0.0
    %359 = vmatpush2.msra.mxu0 0.0
    %360 = vmatprep.subr.mxu0 0.0
    %361 = vmatpush2.msra.mxu0 0.0
    %362 = vmatprep.subr.mxu0 0.0
    %363 = vmatpush2.msra.mxu0 0.0
    %364 = vmatprep.subr.mxu0 0.0
    %365 = vmatpush2.msra.mxu0 0.0
    %366 = vmatprep.subr.mxu0 0.0
    %367 = vmatpush2.msra.mxu0 0.0
    %368 = vmatprep.subr.mxu0 0.0
    %369 = vmatpush2.msra.mxu0 0.0
    %370 = vmatprep.subr.mxu0 0.0
    %371 = vmatpush2.msra.mxu0 0.0
    %372 = vmatprep.subr.mxu0 0.0
    %373 = vmatpush2.msra.mxu0 0.0
    %374 = vmatprep.subr.mxu0 0.0
    %375 = vmatpush2.msra.mxu0 0.0
    %376 = vmatprep.subr.mxu0 0.0
    %377 = vmatpush2.msra.mxu0 0.0
    %378 = vmatprep.subr.mxu0 0.0
    %379 = vmatpush2.msra.mxu0 0.0
    %380 = vmatprep.subr.mxu0 0.0
    %381 = vmatpush2.msra.mxu0 0.0
    %382 = vmatprep.subr.mxu0 0.0
    %383 = vmatpush2.msra.mxu0 0.0
    %384 = vmatprep.subr.mxu0 0.0
    %385 = vmatpush2.msra.mxu0 0.0
    %386 = vmatprep.mubr.f32.mxu0 0.0
    %387 = vmatmul.mubr.f32.gmra.mxu0 %v320
    %v388 = vpop.f32.mrf.mxu0
    %v389 = vadd.f32 %v317, %v388
    %v390 = vpop.f32.mrf.mxu0
    %391 = vdwg.mxu0
    %392 = vst [vmem:[#allocation2] sm:$0xff] %v389
    // Predicated region
    $region38: #{tpu_custom_call.1} parent=1 // pred_check
      _
    $region39: #{tpu_custom_call.1} parent=1 // pred_check_branch
      %394 = sbr.rel (0) target = $region41
    $region40: #{tpu_custom_call.1} parent=1 // pred_region
      %s396 = ssub.s32 128, 128
      %397 = vsyncadd [#allocation3], %s396
      %s399 = sshll.u32 [#allocation2], 4
      %s400 = int_to_ptr.vmem [resolvable:$true] %s399
      %402 = dma.vmem_to_hbm [thread:$0]  %s400, 128, %s9, [#allocation3]
    $region41: #{tpu_custom_call.1} parent=1 // pred_fallthru
      _
    // Predicated region
    $region42: #{tpu_custom_call.1} parent=1 // pred_check
      _
    $region43: #{tpu_custom_call.1} parent=1 // pred_check_branch
      %404 = sbr.rel (0) target = $region45
    $region44: #{tpu_custom_call.1} parent=1 // pred_region
      %405 = dma.done [#allocation3], 128
    $region45: #{tpu_custom_call.1} parent=1 // pred_fallthru
      _
    %406 = vsyncpa [#allocation3], 1

</llo_original>
